<compile_context>
chip_gen: v5e
topology: v5e:2x2
jax: 0.10.0
libtpu: 0.0.40
codegen_flags: <defaults>
</compile_context>

<pallas_src>
import itertools
from functools import partial

import numpy as np
import jax
import jax.numpy as jnp
from jax.experimental import pallas as pl
from jax.experimental.pallas import tpu as pltpu

_PERMS3 = np.array(list(itertools.permutations(range(3))), dtype=np.int64)  # [6, 3]
_N_PERMS = len(_PERMS3)  # 6
_LANE = 128


# ----------------------------- Pallas kernel -------------------------------
def _matcher_kernel(tgt_ref, p_ref, idx_ref, *opt_cost_ref):
    """Inputs : tgt_ref SMEM [9] f32   unit-normalised targets, t_hat[t, d] at 3*t+d
                p_ref   VMEM [9, TILE_B] f32  row 3*q+d = pred_vp{q+1}[:, d] (batch in lanes)
       Outputs: idx_ref  VMEM [1, TILE_B] i32   best permutation id (row of _PERMS3)
                optional cost_ref VMEM [6, TILE_B] f32  per-permutation cost (testing only)."""
    P = p_ref[...]  # [9, TILE_B]

    # 3x3 cost matrix, lane-dense over the batch.  Targets are pre-normalised, so
    # cos(p, t) = dot(p, t_hat) / max(||p||, 1e-8); the prediction-side eps clamp
    # (torch F.cosine_similarity semantics) stays in-kernel.
    cost = [[None] * 3 for _ in range(3)]  # cost[q][t] : [1, TILE_B]
    for q in range(3):
        pq0 = P[3 * q + 0:3 * q + 1, :]
        pq1 = P[3 * q + 1:3 * q + 2, :]
        pq2 = P[3 * q + 2:3 * q + 3, :]
        p2 = pq0 * pq0 + pq1 * pq1 + pq2 * pq2                 # ||p_q||^2 once per query
        inv_pn = jax.lax.rsqrt(jnp.maximum(p2, 1e-16))         # EUP; == 1 / max(||p||, 1e-8)
        for t in range(3):
            # SMEM scalars -> VPU broadcast FMAs (no vector load for the target)
            t0 = tgt_ref[3 * t + 0]
            t1 = tgt_ref[3 * t + 1]
            t2 = tgt_ref[3 * t + 2]
            num = pq0 * t0 + pq1 * t1 + pq2 * t2               # [1, TILE_B]
            cost[q][t] = 1.0 - jnp.abs(num) * inv_pn

    # Exact 3x3 Hungarian assignment by brute force over the 3! permutations,
    # unrolled at trace time. First-minimum tie-break (same as np.argmin).
    # TODO(synk): general-N scipy linear_sum_assignment has no Pallas equivalent;
    # this module only ever solves 3x3, for which the brute force is exact.
    pk_list = []
    best_cost = None
    best_idx = None
    for k in range(_N_PERMS):
        a, b, c = (int(v) for v in _PERMS3[k])
        pk = cost[0][a] + cost[1][b] + cost[2][c]              # [1, TILE_B]
        pk_list.append(pk)
        if k == 0:
            best_cost = pk
            best_idx = jnp.zeros(pk.shape, dtype=jnp.int32)
        else:
            better = pk < best_cost
            best_cost = jnp.where(better, pk, best_cost)
            best_idx = jnp.where(better, jnp.int32(k), best_idx)

    idx_ref[...] = best_idx                                    # [1, TILE_B] full-lane store
    if opt_cost_ref:
        # fused single store instead of 6 masked column writes
        opt_cost_ref[0][...] = jnp.concatenate(pk_list, axis=0)  # [6, TILE_B]


# ------------------------------- wrapper ------------------------------------
@partial(jax.jit, static_argnames=("with_costs",))
def match_vp(pred_vp1, pred_vp2, pred_vp3, tgt3, with_costs=False):
    """Best 3x3 assignment per batch element, fully on device.

    Returns (best_perm [bs] i32, cols [bs, 3] i32[, perm_costs [bs, 6] f32])."""
    bs = pred_vp1.shape[0]

    # Lane-dense layout: batch -> lanes. One [9, bs_pad] operand instead of four.
    P = jnp.concatenate(
        [pred_vp1.astype(jnp.float32).T,
         pred_vp2.astype(jnp.float32).T,
         pred_vp3.astype(jnp.float32).T], axis=0)              # [9, bs]
    bs_p = max(_LANE, ((bs + _LANE - 1) // _LANE) * _LANE)
    if bs_p != bs:
        P = jnp.pad(P, ((0, 0), (0, bs_p - bs)))               # padded lanes -> cost 1, ignored

    tile_b = min(bs_p, 1024)                                   # multiple of 128
    grid = (bs_p // tile_b,)

    # 9-float constant prep (same per-target eps clamp as torch), shipped via SMEM.
    t = tgt3.astype(jnp.float32)                               # [3, 3] (first 3 targets)
    t_hat = t / jnp.maximum(jnp.sqrt(jnp.sum(t * t, axis=-1, keepdims=True)), 1e-8)
    tgt_flat = jnp.reshape(t_hat, (9,))

    in_specs = [
        pl.BlockSpec(memory_space=pltpu.MemorySpace.SMEM),     # targets: scalars in SMEM
        pl.BlockSpec((9, tile_b), lambda i: (0, i)),           # predictions, lane-tiled
    ]
    out_specs = [pl.BlockSpec((1, tile_b), lambda i: (0, i))]
    out_shape = [jax.ShapeDtypeStruct((1, bs_p), jnp.int32)]
    if with_costs:
        out_specs.append(pl.BlockSpec((_N_PERMS, tile_b), lambda i: (0, i)))
        out_shape.append(jax.ShapeDtypeStruct((_N_PERMS, bs_p), jnp.float32))

    outs = pl.pallas_call(
        _matcher_kernel,
        grid=grid,
        in_specs=in_specs,
        out_specs=out_specs,
        out_shape=out_shape,
        compiler_params=pltpu.CompilerParams(
            dimension_semantics=("parallel",)),                # batch tiles shard across TCs
    )(tgt_flat, P)

    idx = outs[0][0, :bs]                                      # [bs] i32
    perms = jnp.asarray(_PERMS3, dtype=jnp.int32)              # [6, 3] constant
    cols = jnp.take(perms, idx, axis=0)                        # [bs, 3] device-side lookup
    if with_costs:
        return idx, cols, outs[1][:, :bs].T                    # costs as [bs, 6] (test only)
    return idx, cols


# ------------------------------- module -------------------------------------
class HungarianMatcher:
    def __init__(self, cost_vp: float = 1.0):
        self.cost_class = cost_vp
        self.thresh_line_pos = np.cos(np.radians(88.0), dtype=np.float32)
        self.thresh_line_neg = np.cos(np.radians(85.0), dtype=np.float32)

    def match_device(self, outputs, targets):
        """Device-resident result: (best_perm [bs] i32, cols [bs, 3] i32). No host sync."""
        pred_vp1 = jnp.asarray(outputs["pred_vp1"])            # [bs, 3]
        pred_vp2 = jnp.asarray(outputs["pred_vp2"])
        pred_vp3 = jnp.asarray(outputs["pred_vp3"])
        tgt_vp = jnp.concatenate([jnp.asarray(v["vp"]) for v in targets], axis=0)  # [T, 3]
        # torch's C.split(3, -1)[0] keeps only the first 3 target columns (assumes T >= 3).
        return match_vp(pred_vp1, pred_vp2, pred_vp3, tgt_vp[:3])

    def __call__(self, outputs, targets):
        _, cols = self.match_device(outputs, targets)
        # Single [bs, 3] int32 D2H transfer, only where the host actually needs indices.
        cols_np = np.asarray(jax.device_get(cols)).astype(np.int64)
        rows = np.arange(3, dtype=np.int64)
        return [(rows.copy(), cols_np[b]) for b in range(cols_np.shape[0])]


# --------------------------- reference (numpy, f64) --------------------------
def _ref_costs(outputs, targets):
    """Full torch-forward semantics: 3x3 cost matrices + the 6 permutation costs."""
    p = np.stack(
        [np.asarray(outputs["pred_vp1"]),
         np.asarray(outputs["pred_vp2"]),
         np.asarray(outputs["pred_vp3"])], axis=1).astype(np.float64)        # [bs, 3, 3]
    tgt = np.concatenate([np.asarray(v["vp"]) for v in targets], 0).astype(np.float64)
    tgt3 = tgt[:3]                                                            # [3, 3]
    pn = np.maximum(np.linalg.norm(p, axis=-1), 1e-8)                         # [bs, 3]
    tn = np.maximum(np.linalg.norm(tgt3, axis=-1), 1e-8)                      # [3]
    cos = np.einsum("bqd,td->bqt", p, tgt3) / (pn[:, :, None] * tn[None, None, :])
    C = 1.0 - np.abs(cos)                                                     # [bs, 3, 3]
    rows = np.arange(3)
    perm_costs = np.stack(
        [C[:, rows, _PERMS3[k]].sum(-1) for k in range(_N_PERMS)], axis=-1)   # [bs, 6]
    return C, perm_costs


# ---------------------------------- main -------------------------------------
if __name__ == "__main__":
    key = jax.random.PRNGKey(0)
    bs = 2

    def unit(k, shape):
        v = jax.random.normal(k, shape, dtype=jnp.float32)
        return v / jnp.linalg.norm(v, axis=-1, keepdims=True)

    k1, k2, k3, k4 = jax.random.split(key, 4)
    outputs = {
        "pred_vp1": unit(k1, (bs, 3)),
        "pred_vp2": unit(k2, (bs, 3)),
        "pred_vp3": unit(k3, (bs, 3)),
    }

    targets = []
    tkeys = jax.random.split(k4, bs)
    for b in range(bs):
        vp = unit(tkeys[b], (3, 3))   # 3 target vanishing points per image
        targets.append({"vp1": vp[0:1], "vp2": vp[1:2], "vp3": vp[2:3], "vp": vp})

    # ---- run the Pallas kernel (testing path, with per-permutation costs) ----
    tgt_vp = jnp.concatenate([v["vp"] for v in targets], axis=0)
    best_idx, cols_dev, perm_costs = match_vp(
        outputs["pred_vp1"], outputs["pred_vp2"], outputs["pred_vp3"],
        tgt_vp[:3], with_costs=True)
    best_idx, cols_dev, perm_costs = jax.block_until_ready(
        (best_idx, cols_dev, perm_costs))

    # ---- validate against a float64 numpy reference of the torch semantics ----
    C_ref, pc_ref = _ref_costs(outputs, targets)
    np.testing.assert_allclose(np.asarray(perm_costs), pc_ref, rtol=1e-5, atol=1e-5)

    # the on-device permutation lookup must agree with _PERMS3[best_idx]
    np.testing.assert_array_equal(np.asarray(cols_dev),
                                  _PERMS3[np.asarray(best_idx)].astype(np.int32))

    # ---- full module path (production: index-only kernel, single D2H transfer) ----
    matcher = HungarianMatcher(cost_vp=1.0)
    indices = matcher(outputs, targets)
    assert len(indices) == bs
    rows = np.arange(3)
    for b, (i, j) in enumerate(indices):
        assert i.dtype == np.int64 and j.dtype == np.int64
        assert i.shape == (3,) and j.shape == (3,)
        chosen_cost = C_ref[b, rows, j].sum()
        # on-device selection must be optimal for the reference costs (ties allowed)
        assert chosen_cost <= pc_ref[b].min() + 1e-5

    print("KERNEL_OK")
</pallas_src>

<mosaic_0001>
module attributes {stable_mosaic.version = 11 : i64} {
  func.func @_matcher_kernel(%arg0: i32, %arg1: memref<9xf32, #tpu.memory_space<smem>>, %arg2: memref<9x128xf32, #tpu.memory_space<vmem>>, %arg3: memref<1x128xi32, #tpu.memory_space<vmem>>, %arg4: memref<6x128xf32, #tpu.memory_space<vmem>>) attributes {dimension_semantics = [#tpu.dimension_semantics<parallel>], iteration_bounds = array<i64: 1>, scalar_prefetch = 0 : i64, scratch_operands = 0 : i64, tpu.core_type = #tpu.core_type<tc>, window_params = [{transform_indices = @transform_0, window_bounds = array<i64: 9>}, {transform_indices = @transform_1, window_bounds = array<i64: 9, 128>}, {transform_indices = @transform_2, window_bounds = array<i64: 1, 128>}, {transform_indices = @transform_3, window_bounds = array<i64: 6, 128>}]} {
    %c0 = arith.constant 0 : index
    %c0_0 = arith.constant 0 : index
    %0 = vector.load %arg2[%c0, %c0_0] : memref<9x128xf32, #tpu.memory_space<vmem>>, vector<9x128xf32>
    %1 = vector.extract_strided_slice %0 {offsets = [0, 0], sizes = [1, 128], strides = [1, 1]} : vector<9x128xf32> to vector<1x128xf32>
    %2 = vector.extract_strided_slice %0 {offsets = [1, 0], sizes = [1, 128], strides = [1, 1]} : vector<9x128xf32> to vector<1x128xf32>
    %3 = vector.extract_strided_slice %0 {offsets = [2, 0], sizes = [1, 128], strides = [1, 1]} : vector<9x128xf32> to vector<1x128xf32>
    %4 = arith.mulf %1, %1 : vector<1x128xf32>
    %5 = arith.mulf %2, %2 : vector<1x128xf32>
    %6 = arith.addf %4, %5 : vector<1x128xf32>
    %7 = arith.mulf %3, %3 : vector<1x128xf32>
    %8 = arith.addf %6, %7 : vector<1x128xf32>
    %cst = arith.constant 1.000000e-16 : f32
    %9 = vector.broadcast %cst : f32 to vector<1x128xf32>
    %10 = arith.maximumf %8, %9 : vector<1x128xf32>
    %11 = math.rsqrt %10 : vector<1x128xf32>
    %c0_1 = arith.constant 0 : index
    %12 = memref.load %arg1[%c0_1] : memref<9xf32, #tpu.memory_space<smem>>
    %c1 = arith.constant 1 : index
    %13 = memref.load %arg1[%c1] : memref<9xf32, #tpu.memory_space<smem>>
    %c2 = arith.constant 2 : index
    %14 = memref.load %arg1[%c2] : memref<9xf32, #tpu.memory_space<smem>>
    %15 = vector.broadcast %12 : f32 to vector<1x128xf32>
    %16 = arith.mulf %1, %15 : vector<1x128xf32>
    %17 = vector.broadcast %13 : f32 to vector<1x128xf32>
    %18 = arith.mulf %2, %17 : vector<1x128xf32>
    %19 = arith.addf %16, %18 : vector<1x128xf32>
    %20 = vector.broadcast %14 : f32 to vector<1x128xf32>
    %21 = arith.mulf %3, %20 : vector<1x128xf32>
    %22 = arith.addf %19, %21 : vector<1x128xf32>
    %23 = math.absf %22 : vector<1x128xf32>
    %24 = arith.mulf %23, %11 : vector<1x128xf32>
    %cst_2 = arith.constant 1.000000e+00 : f32
    %25 = vector.broadcast %cst_2 : f32 to vector<1x128xf32>
    %26 = arith.subf %25, %24 : vector<1x128xf32>
    %c3 = arith.constant 3 : index
    %27 = memref.load %arg1[%c3] : memref<9xf32, #tpu.memory_space<smem>>
    %c4 = arith.constant 4 : index
    %28 = memref.load %arg1[%c4] : memref<9xf32, #tpu.memory_space<smem>>
    %c5 = arith.constant 5 : index
    %29 = memref.load %arg1[%c5] : memref<9xf32, #tpu.memory_space<smem>>
    %30 = vector.broadcast %27 : f32 to vector<1x128xf32>
    %31 = arith.mulf %1, %30 : vector<1x128xf32>
    %32 = vector.broadcast %28 : f32 to vector<1x128xf32>
    %33 = arith.mulf %2, %32 : vector<1x128xf32>
    %34 = arith.addf %31, %33 : vector<1x128xf32>
    %35 = vector.broadcast %29 : f32 to vector<1x128xf32>
    %36 = arith.mulf %3, %35 : vector<1x128xf32>
    %37 = arith.addf %34, %36 : vector<1x128xf32>
    %38 = math.absf %37 : vector<1x128xf32>
    %39 = arith.mulf %38, %11 : vector<1x128xf32>
    %cst_3 = arith.constant 1.000000e+00 : f32
    %40 = vector.broadcast %cst_3 : f32 to vector<1x128xf32>
    %41 = arith.subf %40, %39 : vector<1x128xf32>
    %c6 = arith.constant 6 : index
    %42 = memref.load %arg1[%c6] : memref<9xf32, #tpu.memory_space<smem>>
    %c7 = arith.constant 7 : index
    %43 = memref.load %arg1[%c7] : memref<9xf32, #tpu.memory_space<smem>>
    %c8 = arith.constant 8 : index
    %44 = memref.load %arg1[%c8] : memref<9xf32, #tpu.memory_space<smem>>
    %45 = vector.broadcast %42 : f32 to vector<1x128xf32>
    %46 = arith.mulf %1, %45 : vector<1x128xf32>
    %47 = vector.broadcast %43 : f32 to vector<1x128xf32>
    %48 = arith.mulf %2, %47 : vector<1x128xf32>
    %49 = arith.addf %46, %48 : vector<1x128xf32>
    %50 = vector.broadcast %44 : f32 to vector<1x128xf32>
    %51 = arith.mulf %3, %50 : vector<1x128xf32>
    %52 = arith.addf %49, %51 : vector<1x128xf32>
    %53 = math.absf %52 : vector<1x128xf32>
    %54 = arith.mulf %53, %11 : vector<1x128xf32>
    %cst_4 = arith.constant 1.000000e+00 : f32
    %55 = vector.broadcast %cst_4 : f32 to vector<1x128xf32>
    %56 = arith.subf %55, %54 : vector<1x128xf32>
    %57 = vector.extract_strided_slice %0 {offsets = [3, 0], sizes = [1, 128], strides = [1, 1]} : vector<9x128xf32> to vector<1x128xf32>
    %58 = vector.extract_strided_slice %0 {offsets = [4, 0], sizes = [1, 128], strides = [1, 1]} : vector<9x128xf32> to vector<1x128xf32>
    %59 = vector.extract_strided_slice %0 {offsets = [5, 0], sizes = [1, 128], strides = [1, 1]} : vector<9x128xf32> to vector<1x128xf32>
    %60 = arith.mulf %57, %57 : vector<1x128xf32>
    %61 = arith.mulf %58, %58 : vector<1x128xf32>
    %62 = arith.addf %60, %61 : vector<1x128xf32>
    %63 = arith.mulf %59, %59 : vector<1x128xf32>
    %64 = arith.addf %62, %63 : vector<1x128xf32>
    %cst_5 = arith.constant 1.000000e-16 : f32
    %65 = vector.broadcast %cst_5 : f32 to vector<1x128xf32>
    %66 = arith.maximumf %64, %65 : vector<1x128xf32>
    %67 = math.rsqrt %66 : vector<1x128xf32>
    %c0_6 = arith.constant 0 : index
    %68 = memref.load %arg1[%c0_6] : memref<9xf32, #tpu.memory_space<smem>>
    %c1_7 = arith.constant 1 : index
    %69 = memref.load %arg1[%c1_7] : memref<9xf32, #tpu.memory_space<smem>>
    %c2_8 = arith.constant 2 : index
    %70 = memref.load %arg1[%c2_8] : memref<9xf32, #tpu.memory_space<smem>>
    %71 = vector.broadcast %68 : f32 to vector<1x128xf32>
    %72 = arith.mulf %57, %71 : vector<1x128xf32>
    %73 = vector.broadcast %69 : f32 to vector<1x128xf32>
    %74 = arith.mulf %58, %73 : vector<1x128xf32>
    %75 = arith.addf %72, %74 : vector<1x128xf32>
    %76 = vector.broadcast %70 : f32 to vector<1x128xf32>
    %77 = arith.mulf %59, %76 : vector<1x128xf32>
    %78 = arith.addf %75, %77 : vector<1x128xf32>
    %79 = math.absf %78 : vector<1x128xf32>
    %80 = arith.mulf %79, %67 : vector<1x128xf32>
    %cst_9 = arith.constant 1.000000e+00 : f32
    %81 = vector.broadcast %cst_9 : f32 to vector<1x128xf32>
    %82 = arith.subf %81, %80 : vector<1x128xf32>
    %c3_10 = arith.constant 3 : index
    %83 = memref.load %arg1[%c3_10] : memref<9xf32, #tpu.memory_space<smem>>
    %c4_11 = arith.constant 4 : index
    %84 = memref.load %arg1[%c4_11] : memref<9xf32, #tpu.memory_space<smem>>
    %c5_12 = arith.constant 5 : index
    %85 = memref.load %arg1[%c5_12] : memref<9xf32, #tpu.memory_space<smem>>
    %86 = vector.broadcast %83 : f32 to vector<1x128xf32>
    %87 = arith.mulf %57, %86 : vector<1x128xf32>
    %88 = vector.broadcast %84 : f32 to vector<1x128xf32>
    %89 = arith.mulf %58, %88 : vector<1x128xf32>
    %90 = arith.addf %87, %89 : vector<1x128xf32>
    %91 = vector.broadcast %85 : f32 to vector<1x128xf32>
    %92 = arith.mulf %59, %91 : vector<1x128xf32>
    %93 = arith.addf %90, %92 : vector<1x128xf32>
    %94 = math.absf %93 : vector<1x128xf32>
    %95 = arith.mulf %94, %67 : vector<1x128xf32>
    %cst_13 = arith.constant 1.000000e+00 : f32
    %96 = vector.broadcast %cst_13 : f32 to vector<1x128xf32>
    %97 = arith.subf %96, %95 : vector<1x128xf32>
    %c6_14 = arith.constant 6 : index
    %98 = memref.load %arg1[%c6_14] : memref<9xf32, #tpu.memory_space<smem>>
    %c7_15 = arith.constant 7 : index
    %99 = memref.load %arg1[%c7_15] : memref<9xf32, #tpu.memory_space<smem>>
    %c8_16 = arith.constant 8 : index
    %100 = memref.load %arg1[%c8_16] : memref<9xf32, #tpu.memory_space<smem>>
    %101 = vector.broadcast %98 : f32 to vector<1x128xf32>
    %102 = arith.mulf %57, %101 : vector<1x128xf32>
    %103 = vector.broadcast %99 : f32 to vector<1x128xf32>
    %104 = arith.mulf %58, %103 : vector<1x128xf32>
    %105 = arith.addf %102, %104 : vector<1x128xf32>
    %106 = vector.broadcast %100 : f32 to vector<1x128xf32>
    %107 = arith.mulf %59, %106 : vector<1x128xf32>
    %108 = arith.addf %105, %107 : vector<1x128xf32>
    %109 = math.absf %108 : vector<1x128xf32>
    %110 = arith.mulf %109, %67 : vector<1x128xf32>
    %cst_17 = arith.constant 1.000000e+00 : f32
    %111 = vector.broadcast %cst_17 : f32 to vector<1x128xf32>
    %112 = arith.subf %111, %110 : vector<1x128xf32>
    %113 = vector.extract_strided_slice %0 {offsets = [6, 0], sizes = [1, 128], strides = [1, 1]} : vector<9x128xf32> to vector<1x128xf32>
    %114 = vector.extract_strided_slice %0 {offsets = [7, 0], sizes = [1, 128], strides = [1, 1]} : vector<9x128xf32> to vector<1x128xf32>
    %115 = vector.extract_strided_slice %0 {offsets = [8, 0], sizes = [1, 128], strides = [1, 1]} : vector<9x128xf32> to vector<1x128xf32>
    %116 = arith.mulf %113, %113 : vector<1x128xf32>
    %117 = arith.mulf %114, %114 : vector<1x128xf32>
    %118 = arith.addf %116, %117 : vector<1x128xf32>
    %119 = arith.mulf %115, %115 : vector<1x128xf32>
    %120 = arith.addf %118, %119 : vector<1x128xf32>
    %cst_18 = arith.constant 1.000000e-16 : f32
    %121 = vector.broadcast %cst_18 : f32 to vector<1x128xf32>
    %122 = arith.maximumf %120, %121 : vector<1x128xf32>
    %123 = math.rsqrt %122 : vector<1x128xf32>
    %c0_19 = arith.constant 0 : index
    %124 = memref.load %arg1[%c0_19] : memref<9xf32, #tpu.memory_space<smem>>
    %c1_20 = arith.constant 1 : index
    %125 = memref.load %arg1[%c1_20] : memref<9xf32, #tpu.memory_space<smem>>
    %c2_21 = arith.constant 2 : index
    %126 = memref.load %arg1[%c2_21] : memref<9xf32, #tpu.memory_space<smem>>
    %127 = vector.broadcast %124 : f32 to vector<1x128xf32>
    %128 = arith.mulf %113, %127 : vector<1x128xf32>
    %129 = vector.broadcast %125 : f32 to vector<1x128xf32>
    %130 = arith.mulf %114, %129 : vector<1x128xf32>
    %131 = arith.addf %128, %130 : vector<1x128xf32>
    %132 = vector.broadcast %126 : f32 to vector<1x128xf32>
    %133 = arith.mulf %115, %132 : vector<1x128xf32>
    %134 = arith.addf %131, %133 : vector<1x128xf32>
    %135 = math.absf %134 : vector<1x128xf32>
    %136 = arith.mulf %135, %123 : vector<1x128xf32>
    %cst_22 = arith.constant 1.000000e+00 : f32
    %137 = vector.broadcast %cst_22 : f32 to vector<1x128xf32>
    %138 = arith.subf %137, %136 : vector<1x128xf32>
    %c3_23 = arith.constant 3 : index
    %139 = memref.load %arg1[%c3_23] : memref<9xf32, #tpu.memory_space<smem>>
    %c4_24 = arith.constant 4 : index
    %140 = memref.load %arg1[%c4_24] : memref<9xf32, #tpu.memory_space<smem>>
    %c5_25 = arith.constant 5 : index
    %141 = memref.load %arg1[%c5_25] : memref<9xf32, #tpu.memory_space<smem>>
    %142 = vector.broadcast %139 : f32 to vector<1x128xf32>
    %143 = arith.mulf %113, %142 : vector<1x128xf32>
    %144 = vector.broadcast %140 : f32 to vector<1x128xf32>
    %145 = arith.mulf %114, %144 : vector<1x128xf32>
    %146 = arith.addf %143, %145 : vector<1x128xf32>
    %147 = vector.broadcast %141 : f32 to vector<1x128xf32>
    %148 = arith.mulf %115, %147 : vector<1x128xf32>
    %149 = arith.addf %146, %148 : vector<1x128xf32>
    %150 = math.absf %149 : vector<1x128xf32>
    %151 = arith.mulf %150, %123 : vector<1x128xf32>
    %cst_26 = arith.constant 1.000000e+00 : f32
    %152 = vector.broadcast %cst_26 : f32 to vector<1x128xf32>
    %153 = arith.subf %152, %151 : vector<1x128xf32>
    %c6_27 = arith.constant 6 : index
    %154 = memref.load %arg1[%c6_27] : memref<9xf32, #tpu.memory_space<smem>>
    %c7_28 = arith.constant 7 : index
    %155 = memref.load %arg1[%c7_28] : memref<9xf32, #tpu.memory_space<smem>>
    %c8_29 = arith.constant 8 : index
    %156 = memref.load %arg1[%c8_29] : memref<9xf32, #tpu.memory_space<smem>>
    %157 = vector.broadcast %154 : f32 to vector<1x128xf32>
    %158 = arith.mulf %113, %157 : vector<1x128xf32>
    %159 = vector.broadcast %155 : f32 to vector<1x128xf32>
    %160 = arith.mulf %114, %159 : vector<1x128xf32>
    %161 = arith.addf %158, %160 : vector<1x128xf32>
    %162 = vector.broadcast %156 : f32 to vector<1x128xf32>
    %163 = arith.mulf %115, %162 : vector<1x128xf32>
    %164 = arith.addf %161, %163 : vector<1x128xf32>
    %165 = math.absf %164 : vector<1x128xf32>
    %166 = arith.mulf %165, %123 : vector<1x128xf32>
    %cst_30 = arith.constant 1.000000e+00 : f32
    %167 = vector.broadcast %cst_30 : f32 to vector<1x128xf32>
    %168 = arith.subf %167, %166 : vector<1x128xf32>
    %169 = arith.addf %26, %97 : vector<1x128xf32>
    %170 = arith.addf %169, %168 : vector<1x128xf32>
    %c0_i32 = arith.constant 0 : i32
    %171 = vector.broadcast %c0_i32 : i32 to vector<1x128xi32>
    %172 = arith.addf %26, %112 : vector<1x128xf32>
    %173 = arith.addf %172, %153 : vector<1x128xf32>
    %174 = arith.cmpf olt, %173, %170 : vector<1x128xf32>
    %175 = arith.select %174, %173, %170 : vector<1x128xi1>, vector<1x128xf32>
    %c1_i32 = arith.constant 1 : i32
    %176 = vector.broadcast %c1_i32 : i32 to vector<1x128xi32>
    %177 = arith.select %174, %176, %171 : vector<1x128xi1>, vector<1x128xi32>
    %178 = arith.addf %41, %82 : vector<1x128xf32>
    %179 = arith.addf %178, %168 : vector<1x128xf32>
    %180 = arith.cmpf olt, %179, %175 : vector<1x128xf32>
    %181 = arith.select %180, %179, %175 : vector<1x128xi1>, vector<1x128xf32>
    %c2_i32 = arith.constant 2 : i32
    %182 = vector.broadcast %c2_i32 : i32 to vector<1x128xi32>
    %183 = arith.select %180, %182, %177 : vector<1x128xi1>, vector<1x128xi32>
    %184 = arith.addf %41, %112 : vector<1x128xf32>
    %185 = arith.addf %184, %138 : vector<1x128xf32>
    %186 = arith.cmpf olt, %185, %181 : vector<1x128xf32>
    %187 = arith.select %186, %185, %181 : vector<1x128xi1>, vector<1x128xf32>
    %c3_i32 = arith.constant 3 : i32
    %188 = vector.broadcast %c3_i32 : i32 to vector<1x128xi32>
    %189 = arith.select %186, %188, %183 : vector<1x128xi1>, vector<1x128xi32>
    %190 = arith.addf %56, %82 : vector<1x128xf32>
    %191 = arith.addf %190, %153 : vector<1x128xf32>
    %192 = arith.cmpf olt, %191, %187 : vector<1x128xf32>
    %193 = arith.select %192, %191, %187 : vector<1x128xi1>, vector<1x128xf32>
    %c4_i32 = arith.constant 4 : i32
    %194 = vector.broadcast %c4_i32 : i32 to vector<1x128xi32>
    %195 = arith.select %192, %194, %189 : vector<1x128xi1>, vector<1x128xi32>
    %196 = arith.addf %56, %97 : vector<1x128xf32>
    %197 = arith.addf %196, %138 : vector<1x128xf32>
    %198 = arith.cmpf olt, %197, %193 : vector<1x128xf32>
    %c5_i32 = arith.constant 5 : i32
    %199 = vector.broadcast %c5_i32 : i32 to vector<1x128xi32>
    %200 = arith.select %198, %199, %195 : vector<1x128xi1>, vector<1x128xi32>
    %c0_31 = arith.constant 0 : index
    %c0_32 = arith.constant 0 : index
    %201 = vector.load %arg3[%c0_31, %c0_32] : memref<1x128xi32, #tpu.memory_space<vmem>>, vector<1x128xi32>
    tpu.vector_store %arg3[%c0_31, %c0_32], %200 {strides = array<i32>} : memref<1x128xi32, #tpu.memory_space<vmem>>, vector<1x128xi32>,
    %202 = tpu.concatenate %170, %173, %179, %185, %191, %197 in 0 : vector<1x128xf32>, vector<1x128xf32>, vector<1x128xf32>, vector<1x128xf32>, vector<1x128xf32>, vector<1x128xf32> -> vector<6x128xf32>
    %c0_33 = arith.constant 0 : index
    %c0_34 = arith.constant 0 : index
    %203 = vector.load %arg4[%c0_33, %c0_34] : memref<6x128xf32, #tpu.memory_space<vmem>>, vector<6x128xf32>
    tpu.vector_store %arg4[%c0_33, %c0_34], %202 {strides = array<i32>} : memref<6x128xf32, #tpu.memory_space<vmem>>, vector<6x128xf32>,
    return
  }
  func.func @transform_0(%arg0: i32) -> i32 {
    %c0_i32 = arith.constant 0 : i32
    %c0_i32_0 = arith.constant 0 : i32
    return %c0_i32 : i32
  }
  func.func @transform_1(%arg0: i32) -> (i32, i32) {
    %c0_i32 = arith.constant 0 : i32
    %c0_i32_0 = arith.constant 0 : i32
    return %c0_i32, %arg0 : i32, i32
  }
  func.func @transform_2(%arg0: i32) -> (i32, i32) {
    %c0_i32 = arith.constant 0 : i32
    %c0_i32_0 = arith.constant 0 : i32
    return %c0_i32, %arg0 : i32, i32
  }
  func.func @transform_3(%arg0: i32) -> (i32, i32) {
    %c0_i32 = arith.constant 0 : i32
    %c0_i32_0 = arith.constant 0 : i32
    return %c0_i32, %arg0 : i32, i32
  }
}

</mosaic_0001>

<llo_original>
// kernel: match_vp.1
$region0: #{match_vp.1}
  #allocation0 [shape = 'u32[]', space=smem, size = 0x4, offset = 0x4, fixed_abs, tag = 'smem constant byte address 0x4 - core index']
  #allocation1 [shape = 'u32[72,128]{1,0:T(1,128)}', space=vmem, size = 0x9000, scoped, tag = 'internal scratch']
  %s0 = inlined_call_operand.vmem [shape: f32[9], index: 0, kind: input, shape index: {}]
  %s1 = inlined_call_operand.vmem [shape: f32[9,128], index: 1, kind: input, shape index: {}]
  %s2 = inlined_call_operand.vmem [shape: s32[1,128], index: 2, kind: output, shape index: {0}]
  %s3 = inlined_call_operand.vmem [shape: f32[6,128], index: 3, kind: output, shape index: {1}]
  %4 = xla_tuple %s2, %s3
  %s5 = sld [smem:[#allocation0]]
  $region30: #{match_vp.1} parent=0
    _
  %s7 = ssub.s32 1, %s5
  %s8 = scalar_select 0, %s7, %s5
  $region1: #{match_vp.1} parent=0
    #allocation2 [shape = 'u8[512]{0}', space=smem, size = 0x200, scoped, tag = 'input window, operand 0, single buffered']
    #allocation3 [shape = 's32[1]{0}', space=sflag, size = 0x4, scoped, tag = 'scoped memory for match_vp.1']
    %9 = vsyncpa [#allocation3], 0
    // Predicated region
    $region2: #{match_vp.1} parent=1 // pred_check
      _
    $region3: #{match_vp.1} parent=1 // pred_check_branch
      %11 = sbr.rel (0) target = $region5
    $region4: #{match_vp.1} parent=1 // pred_region
      %13 = vsyncadd [#allocation3], 0
      %s15 = sshll.u32 %s0, 4
      %s16 = int_to_ptr.vmem [resolvable:$true] %s15
      %18 = dma.vmem_to_smem %s16, 16, [#allocation2], [#allocation3]
    $region5: #{match_vp.1} parent=1 // pred_fallthru
      _
    // Predicated region
    $region6: #{match_vp.1} parent=1 // pred_check
      _
    $region7: #{match_vp.1} parent=1 // pred_check_branch
      %20 = sbr.rel (0) target = $region9
    $region8: #{match_vp.1} parent=1 // pred_region
      _
    $region9: #{match_vp.1} parent=1 // pred_fallthru
      _
    // Predicated region
    $region10: #{match_vp.1} parent=1 // pred_check
      _
    $region11: #{match_vp.1} parent=1 // pred_check_branch
      %22 = sbr.rel (0) target = $region13
    $region12: #{match_vp.1} parent=1 // pred_region
      %24 = dma.done [#allocation3], 16
    $region13: #{match_vp.1} parent=1 // pred_fallthru
      _
    %25 = sfence
    %v26 = vld [vmem:[%s1] sm:$0xff]
    %v27 = vld [vmem:[%s1 + $0x8] sm:$0x1]
    %v28 = vmul.f32 %v26, %v26
    %v30 = vrot.slane %v28, 1
    %v32 = vadd.f32 %v28, %v30
    %v33 = vrot.slane %v28, 2
    %v35 = vadd.f32 %v32, %v33
    %v36 = vmax.f32 %v35, 1e-16
    %v37 = vrsqrt.pop %v36
    %v38 = vmul.f32 %v37, %v36
    %v39 = vmul.f32 %v38, %v37
    %v40 = vmul.f32 0.5, %v39
    %v41 = vsub.f32 1.5, %v40
    %v42 = vmul.f32 %v37, %v41
    %vm43 = vweird.f32 %v36
    %vm44 = vweird.f32 %v37
    %vm45 = vmor %vm43, %vm44
    %v46 = vsel %vm45, %v37, %v42
    %s47 = sld [smem:[#allocation2]]
    %s48 = sld [smem:[#allocation2 + $0x1]]
    %s49 = sld [smem:[#allocation2 + $0x2]]
    %v50 = vstv %s47
    %v51 = vmul.f32 %v26, %v50
    %v52 = vstv %s48
    %v53 = vmul.f32 %v26, %v52
    %v55 = vrot.slane %v53, 1
    %v57 = vadd.f32 %v51, %v55
    %v58 = vstv %s49
    %v59 = vmul.f32 %v26, %v58
    %v61 = vrot.slane %v59, 2
    %v63 = vadd.f32 %v57, %v61
    %v64 = vand.u32 2147483647, %v63
    %v65 = vmul.f32 %v64, %v46
    %v66 = vsub.f32 1.0, %v65
    %s67 = sld [smem:[#allocation2 + $0x3]]
    %s68 = sld [smem:[#allocation2 + $0x4]]
    %s69 = sld [smem:[#allocation2 + $0x5]]
    %v70 = vstv %s67
    %v71 = vmul.f32 %v26, %v70
    %v72 = vstv %s68
    %v73 = vmul.f32 %v26, %v72
    %v75 = vrot.slane %v73, 1
    %v77 = vadd.f32 %v71, %v75
    %v78 = vstv %s69
    %v79 = vmul.f32 %v26, %v78
    %v81 = vrot.slane %v79, 2
    %v83 = vadd.f32 %v77, %v81
    %v84 = vand.u32 2147483647, %v83
    %v85 = vmul.f32 %v84, %v46
    %v86 = vsub.f32 1.0, %v85
    %s87 = sld [smem:[#allocation2 + $0x6]]
    %s88 = sld [smem:[#allocation2 + $0x7]]
    %s89 = sld [smem:[#allocation2 + $0x8]]
    %v90 = vstv %s87
    %v91 = vmul.f32 %v26, %v90
    %v92 = vstv %s88
    %v93 = vmul.f32 %v26, %v92
    %v95 = vrot.slane %v93, 1
    %v97 = vadd.f32 %v91, %v95
    %v98 = vstv %s89
    %v99 = vmul.f32 %v26, %v98
    %v101 = vrot.slane %v99, 2
    %v103 = vadd.f32 %v97, %v101
    %v104 = vand.u32 2147483647, %v103
    %v105 = vmul.f32 %v104, %v46
    %v106 = vsub.f32 1.0, %v105
    %v107 = vmul.f32 %v27, %v27
    %v109 = vrot.slane %v107, 2
    %v111 = vadd.f32 %v32, %v109
    %v112 = vmax.f32 %v111, 1e-16
    %v113 = vrsqrt.pop %v112
    %v114 = vmul.f32 %v113, %v112
    %v115 = vmul.f32 %v114, %v113
    %v116 = vmul.f32 0.5, %v115
    %v117 = vsub.f32 1.5, %v116
    %v118 = vmul.f32 %v113, %v117
    %vm119 = vweird.f32 %v112
    %vm120 = vweird.f32 %v113
    %vm121 = vmor %vm119, %vm120
    %v122 = vsel %vm121, %v113, %v118
    %v123 = vmul.f32 %v27, %v58
    %v125 = vrot.slane %v123, 2
    %v127 = vadd.f32 %v57, %v125
    %v128 = vand.u32 2147483647, %v127
    %v129 = vmul.f32 %v128, %v122
    %v130 = vsub.f32 1.0, %v129
    %v131 = vmul.f32 %v27, %v78
    %v133 = vrot.slane %v131, 2
    %v135 = vadd.f32 %v77, %v133
    %v136 = vand.u32 2147483647, %v135
    %v137 = vmul.f32 %v136, %v122
    %v138 = vsub.f32 1.0, %v137
    %v139 = vmul.f32 %v27, %v98
    %v141 = vrot.slane %v139, 2
    %v143 = vadd.f32 %v97, %v141
    %v144 = vand.u32 2147483647, %v143
    %v145 = vmul.f32 %v144, %v122
    %v146 = vsub.f32 1.0, %v145
    %v148 = vrot.slane %v86, 3
    %v150 = vadd.f32 %v66, %v148
    %v152 = vrot.slane %v146, 6
    %v154 = vadd.f32 %v150, %v152
    %v156 = vrot.slane %v106, 3
    %v158 = vadd.f32 %v66, %v156
    %v160 = vrot.slane %v138, 6
    %v162 = vadd.f32 %v158, %v160
    %vm163 = vcmp.lt.f32.partialorder %v162, %v154
    %v164 = vsel %vm163, %v162, %v154
    %v165 = vsel %vm163, 1, 0
    %v167 = vrot.slane %v66, 3
    %v169 = vadd.f32 %v86, %v167
    %v170 = vadd.f32 %v169, %v152
    %vm171 = vcmp.lt.f32.partialorder %v170, %v164
    %v172 = vsel %vm171, %v170, %v164
    %v173 = vsel %vm171, 2, %v165
    %v174 = vadd.f32 %v86, %v156
    %v176 = vrot.slane %v130, 6
    %v178 = vadd.f32 %v174, %v176
    %vm179 = vcmp.lt.f32.partialorder %v178, %v172
    %v180 = vsel %vm179, %v178, %v172
    %v181 = vsel %vm179, 3, %v173
    %v182 = vadd.f32 %v106, %v167
    %v183 = vadd.f32 %v182, %v160
    %vm184 = vcmp.lt.f32.partialorder %v183, %v180
    %v185 = vsel %vm184, %v183, %v180
    %v186 = vsel %vm184, 4, %v181
    %v187 = vadd.f32 %v106, %v148
    %v188 = vadd.f32 %v187, %v176
    %vm189 = vcmp.lt.f32.partialorder %v188, %v185
    %v190 = vsel %vm189, 5, %v186
    %191 = vst [vmem:[%s2] sm:$0x1] %v190
    %v193 = vrot.slane %v162, 7
    %v196 = vrot.slane %v170, 6
    %v199 = vrot.slane %v178, 5
    %v202 = vrot.slane %v183, 4
    %v205 = vrot.slane %v188, 3
    %vm207 = vcmask 1040384
    %v208 = vsel %vm207, %v154, %v193
    %vm209 = vcmask 1041408
    %v210 = vsel %vm209, %v208, %v196
    %vm211 = vcmask 1042432
    %v212 = vsel %vm211, %v210, %v199
    %vm213 = vcmask 1043456
    %v214 = vsel %vm213, %v212, %v202
    %vm215 = vcmask 1044480
    %v216 = vsel %vm215, %v214, %v205
    %217 = vst [vmem:[%s3] sm:$0x3f] %v216
    // Predicated region
    $region14: #{match_vp.1} parent=1 // pred_check
      _
    $region15: #{match_vp.1} parent=1 // pred_check_branch
      %219 = sbr.rel (0) target = $region17
    $region16: #{match_vp.1} parent=1 // pred_region
      _
    $region17: #{match_vp.1} parent=1 // pred_fallthru
      _
    // Predicated region
    $region18: #{match_vp.1} parent=1 // pred_check
      _
    $region19: #{match_vp.1} parent=1 // pred_check_branch
      %221 = sbr.rel (0) target = $region21
    $region20: #{match_vp.1} parent=1 // pred_region
      _
    $region21: #{match_vp.1} parent=1 // pred_fallthru
      _
    // Predicated region
    $region22: #{match_vp.1} parent=1 // pred_check
      _
    $region23: #{match_vp.1} parent=1 // pred_check_branch
      %223 = sbr.rel (0) target = $region25
    $region24: #{match_vp.1} parent=1 // pred_region
      _
    $region25: #{match_vp.1} parent=1 // pred_fallthru
      _
    // Predicated region
    $region26: #{match_vp.1} parent=1 // pred_check
      _
    $region27: #{match_vp.1} parent=1 // pred_check_branch
      %225 = sbr.rel (0) target = $region29
    $region28: #{match_vp.1} parent=1 // pred_region
      _
    $region29: #{match_vp.1} parent=1 // pred_fallthru
      _
    %226 = vsyncpa [#allocation3], 1

</llo_original>
